<compile_context>
chip_gen: v7x
topology: tpu7x:2x2x1
jax: 0.10.0
libtpu: 0.0.40
codegen_flags: <defaults>
</compile_context>

<pallas_src>
from functools import partial

import jax
import jax.numpy as jnp
from jax.experimental import pallas as pl
from jax.experimental.pallas import tpu as pltpu

_TILE_BYTES = 4 * 1024 * 1024   # per-tile target (double-buffered in+out ~= 16 MiB live)
_ROW_TARGET = 256               # default row-tile target (multiple of 8)


def _scaling_kernel(a_ref, b_ref, x_ref, o_ref, *, gr):
    # a_ref / b_ref : VMEM f32[R_pad, 1]  resident per-row affine constants
    # x_ref / o_ref : VMEM    [tr, tn]    lane-dense flattened pixel tile
    if gr == 1:
        a = a_ref[...]
        b = b_ref[...]
    else:
        tr = x_ref.shape[0]                              # static block rows (multiple of 8)
        r0 = pl.multiple_of(pl.program_id(0) * tr, 8)    # aligned row offset of this tile
        a = a_ref[pl.ds(r0, tr), :]
        b = b_ref[pl.ds(r0, tr), :]
    x = x_ref[...].astype(jnp.float32)
    o_ref[...] = (x * a + b).astype(o_ref.dtype)


def _fold_factor(R, N):
    """Smallest k dividing N such that R*k is a multiple of 8 and the lane dim
    stays >= 128. Returns 1 if folding is unnecessary or impossible."""
    if R % 8 == 0:
        return 1
    for k in range(2, 129):
        if N % k == 0 and (R * k) % 8 == 0 and (N // k) >= 128:
            return k
    return 1


def _choose_tiles(R, N, itemsize, row_target=None, lane_target=None):
    """Pick (tr, tn, gr, gc). tr is a multiple of 8 or the full row dim; tn is a
    multiple of 128 or the full lane dim; grid uses cdiv so edges may be partial."""
    elem_budget = max(8 * 128, _TILE_BYTES // itemsize)

    row_t = _ROW_TARGET if row_target is None else max(8, (row_target // 8) * 8)
    tr = R if R <= row_t else row_t                       # full dim, else multiple of 8

    lane_budget = max(128, (elem_budget // tr) // 128 * 128)
    if lane_target is not None:
        lane_budget = max(128, (lane_target // 128) * 128)
    tn = N if N <= lane_budget else lane_budget           # full dim, else multiple of 128

    gr, gc = pl.cdiv(R, tr), pl.cdiv(N, tn)

    # v7x megacore: avoid a degenerate (1, 1) grid when rows can be split cheaply.
    if gr * gc == 1 and R >= 16:
        half = (R + 1) // 2
        tr = max(8, ((half + 7) // 8) * 8)
        gr = pl.cdiv(R, tr)

    return tr, tn, gr, gc


def scaling_layer(x: jax.Array, shift: jax.Array, scale: jax.Array,
                  *, row_tile=None, lane_tile=None) -> jax.Array:
    """(x - shift) / scale with per-channel shift/scale, NCHW (PyTorch semantics)."""
    B, C, H, W = x.shape
    assert shift.shape == (C,) and scale.shape == (C,)

    # Affine form: (x - shift) / scale == x * a + b.
    a = (1.0 / scale).astype(jnp.float32)
    b = (-shift.astype(jnp.float32)) * a

    R, N = B * C, H * W
    k = _fold_factor(R, N)            # fold pixels into rows if R isn't sublane-friendly
    R_f, N_f = R * k, N // k
    x2 = x.reshape(R_f, N_f)          # row r -> original (b, c) row r // k

    tr, tn, gr, gc = _choose_tiles(R_f, N_f, x2.dtype.itemsize, row_tile, lane_tile)
    R_pad = gr * tr                   # pad constants so in-kernel slices never go OOB

    ch = (jnp.minimum(jnp.arange(R_pad), R_f - 1) // k) % C
    a_rows = a[ch].reshape(R_pad, 1)
    b_rows = b[ch].reshape(R_pad, 1)

    out = pl.pallas_call(
        partial(_scaling_kernel, gr=gr),
        out_shape=jax.ShapeDtypeStruct((R_f, N_f), x.dtype),
        grid=(gr, gc),
        in_specs=[
            pl.BlockSpec((R_pad, 1), lambda i, j: (0, 0)),   # resident a (DMA'd once)
            pl.BlockSpec((R_pad, 1), lambda i, j: (0, 0)),   # resident b (DMA'd once)
            pl.BlockSpec((tr, tn), lambda i, j: (i, j)),     # pixel tile
        ],
        out_specs=pl.BlockSpec((tr, tn), lambda i, j: (i, j)),
        compiler_params=pltpu.CompilerParams(
            dimension_semantics=("parallel", "parallel"),
            vmem_limit_bytes=32 * 1024 * 1024,
        ),
    )(a_rows, b_rows, x2)

    return out.reshape(B, C, H, W)


if __name__ == "__main__":
    # Buffers exactly as in ScalingLayer.__init__ (deterministic, no checkpoint).
    shift = jnp.array([-0.030, -0.088, -0.188], dtype=jnp.float32)
    scale = jnp.array([0.458, 0.448, 0.450], dtype=jnp.float32)

    def ref_fn(t):
        return (t - shift[None, :, None, None]) / scale[None, :, None, None]

    key0, key1 = jax.random.split(jax.random.PRNGKey(0))

    # Case 1: small NCHW input (batch=2, channels=3, spatial=16), single-tile path.
    x1 = jax.random.uniform(key0, (2, 3, 16, 16), dtype=jnp.float32, minval=-1.0, maxval=1.0)
    out1 = jax.block_until_ready(scaling_layer(x1, shift, scale))
    assert out1.shape == x1.shape and out1.dtype == x1.dtype
    assert jnp.allclose(out1, ref_fn(x1), rtol=1e-5, atol=1e-6)

    # Case 2: odd shape exercising row folding (B*C=3 -> fold k=8), a multi-block
    # grid, resident-constant slicing and a partial lane-edge block.
    x2 = jax.random.uniform(key1, (1, 3, 32, 40), dtype=jnp.float32, minval=-1.0, maxval=1.0)
    out2 = jax.block_until_ready(scaling_layer(x2, shift, scale, row_tile=8, lane_tile=128))
    assert out2.shape == x2.shape and out2.dtype == x2.dtype
    assert jnp.allclose(out2, ref_fn(x2), rtol=1e-5, atol=1e-6)

    print("KERNEL_OK")
</pallas_src>

<mosaic_0001>
module attributes {stable_mosaic.version = 11 : i64} {
  func.func @_scaling_kernel(%arg0: i32, %arg1: i32, %arg2: memref<6x1xf32, #tpu.memory_space<vmem>>, %arg3: memref<6x1xf32, #tpu.memory_space<vmem>>, %arg4: memref<6x256xf32, #tpu.memory_space<vmem>>, %arg5: memref<6x256xf32, #tpu.memory_space<vmem>>) attributes {dimension_semantics = [#tpu.dimension_semantics<parallel>, #tpu.dimension_semantics<parallel>], iteration_bounds = array<i64: 1, 1>, scalar_prefetch = 0 : i64, scratch_operands = 0 : i64, tpu.core_type = #tpu.core_type<tc>, window_params = [{pipeline_mode = #tpu.pipeline_mode<synchronous>, transform_indices = @transform_0, window_bounds = array<i64: 6, 1>}, {pipeline_mode = #tpu.pipeline_mode<synchronous>, transform_indices = @transform_1, window_bounds = array<i64: 6, 1>}, {transform_indices = @transform_2, window_bounds = array<i64: 6, 256>}, {transform_indices = @transform_3, window_bounds = array<i64: 6, 256>}]} {
    %c0 = arith.constant 0 : index
    %c0_0 = arith.constant 0 : index
    %0 = vector.load %arg2[%c0, %c0_0] : memref<6x1xf32, #tpu.memory_space<vmem>>, vector<6x1xf32>
    %c0_1 = arith.constant 0 : index
    %c0_2 = arith.constant 0 : index
    %1 = vector.load %arg3[%c0_1, %c0_2] : memref<6x1xf32, #tpu.memory_space<vmem>>, vector<6x1xf32>
    %c0_3 = arith.constant 0 : index
    %c0_4 = arith.constant 0 : index
    %2 = vector.load %arg4[%c0_3, %c0_4] : memref<6x256xf32, #tpu.memory_space<vmem>>, vector<6x256xf32>
    %3 = vector.broadcast %0 : vector<6x1xf32> to vector<6x256xf32>
    %4 = arith.mulf %2, %3 : vector<6x256xf32>
    %5 = vector.broadcast %1 : vector<6x1xf32> to vector<6x256xf32>
    %6 = arith.addf %4, %5 : vector<6x256xf32>
    %c0_5 = arith.constant 0 : index
    %c0_6 = arith.constant 0 : index
    %7 = vector.load %arg5[%c0_5, %c0_6] : memref<6x256xf32, #tpu.memory_space<vmem>>, vector<6x256xf32>
    tpu.vector_store %arg5[%c0_5, %c0_6], %6 {strides = array<i32>} : memref<6x256xf32, #tpu.memory_space<vmem>>, vector<6x256xf32>,
    return
  }
  func.func @transform_0(%arg0: i32, %arg1: i32) -> (i32, i32) {
    %c0_i32 = arith.constant 0 : i32
    %c0_i32_0 = arith.constant 0 : i32
    %c0_i32_1 = arith.constant 0 : i32
    return %c0_i32, %c0_i32_0 : i32, i32
  }
  func.func @transform_1(%arg0: i32, %arg1: i32) -> (i32, i32) {
    %c0_i32 = arith.constant 0 : i32
    %c0_i32_0 = arith.constant 0 : i32
    %c0_i32_1 = arith.constant 0 : i32
    return %c0_i32, %c0_i32_0 : i32, i32
  }
  func.func @transform_2(%arg0: i32, %arg1: i32) -> (i32, i32) {
    %c0_i32 = arith.constant 0 : i32
    return %arg0, %arg1 : i32, i32
  }
  func.func @transform_3(%arg0: i32, %arg1: i32) -> (i32, i32) {
    %c0_i32 = arith.constant 0 : i32
    return %arg0, %arg1 : i32, i32
  }
}

</mosaic_0001>

<llo_original>
// kernel: tpu_custom_call.1
$region0: #{tpu_custom_call.1}
  #allocation0 [shape = 'u32[]', space=smem, size = 0x4, offset = 0x4, fixed_abs, tag = 'smem constant byte address 0x4 - core index']
  #allocation1 [shape = 'u32[144,128]{1,0:T(1,128)}', space=vmem, size = 0x12000, scoped, tag = 'internal scratch']
  %s0 = inlined_call_operand.vmem [shape: f32[6,1], index: 0, kind: input, shape index: {}]
  %s1 = inlined_call_operand.vmem [shape: f32[6,1], index: 1, kind: input, shape index: {}]
  %s2 = inlined_call_operand.vmem [shape: f32[6,256], index: 2, kind: input, shape index: {}]
  %s3 = inlined_call_operand.hbm [shape: f32[6,256], index: 3, kind: output, shape index: {}]
  %s4 = sld [smem:[#allocation0]]
  $region22: #{tpu_custom_call.1} parent=0
    _
  %s6 = ssub.s32 1, %s4
  %s7 = scalar_select 0, %s6, %s4
  $region1: #{tpu_custom_call.1} parent=0
    #allocation2 [shape = 'u8[8192]{0}', space=vmem, size = 0x2000, scoped, tag = 'output window, operand 0, single buffered']
    #allocation3 [shape = 's32[1]{0}', space=sflag, size = 0x4, scoped, tag = 'scoped memory for tpu_custom_call.1']
    %8 = vsyncpa [#allocation3], 0
    // Predicated region
    $region2: #{tpu_custom_call.1} parent=1 // pred_check
      _
    $region3: #{tpu_custom_call.1} parent=1 // pred_check_branch
      %10 = sbr.rel (0) target = $region5
    $region4: #{tpu_custom_call.1} parent=1 // pred_region
      _
    $region5: #{tpu_custom_call.1} parent=1 // pred_fallthru
      _
    // Predicated region
    $region6: #{tpu_custom_call.1} parent=1 // pred_check
      _
    $region7: #{tpu_custom_call.1} parent=1 // pred_check_branch
      %12 = sbr.rel (0) target = $region9
    $region8: #{tpu_custom_call.1} parent=1 // pred_region
      _
    $region9: #{tpu_custom_call.1} parent=1 // pred_fallthru
      _
    // Predicated region
    $region10: #{tpu_custom_call.1} parent=1 // pred_check
      _
    $region11: #{tpu_custom_call.1} parent=1 // pred_check_branch
      %14 = sbr.rel (0) target = $region13
    $region12: #{tpu_custom_call.1} parent=1 // pred_region
      _
    $region13: #{tpu_custom_call.1} parent=1 // pred_fallthru
      _
    %v15 = vld [vmem:[%s0] sm:$0x3f]
    %v16 = vld [vmem:[%s1] sm:$0x3f]
    %v17 = vld [vmem:[%s2] sm:$0x3f]
    %v18 = vld [vmem:[%s2 + $0x8] sm:$0x3f]
    %20 = vset.pattern.permute.xlu0 0
    %21 = vperm.xlu0 %20, %v15
    %v22 = vpop.permute.xlu0 %21
    %v24 = vmul.f32 %v17, %v22
    %v25 = vmul.f32 %v18, %v22
    %27 = vset.pattern.permute.xlu0 0
    %28 = vperm.xlu0 %27, %v16
    %v29 = vpop.permute.xlu0 %28
    %v31 = vadd.f32 %v24, %v29
    %v32 = vadd.f32 %v25, %v29
    %33 = vst [vmem:[#allocation2] sm:$0x3f] %v31
    %34 = vst [vmem:[#allocation2 + $0x8] sm:$0x3f] %v32
    // Predicated region
    $region14: #{tpu_custom_call.1} parent=1 // pred_check
      _
    $region15: #{tpu_custom_call.1} parent=1 // pred_check_branch
      %36 = sbr.rel (0) target = $region17
    $region16: #{tpu_custom_call.1} parent=1 // pred_region
      %s38 = ssub.s32 256, 256
      %39 = vsyncadd [#allocation3], %s38
      %s41 = sshll.u32 [#allocation2], 4
      %s42 = int_to_ptr.vmem [resolvable:$true] %s41
      %44 = dma.vmem_to_hbm [thread:$0]  %s42, 256, %s3, [#allocation3]
    $region17: #{tpu_custom_call.1} parent=1 // pred_fallthru
      _
    // Predicated region
    $region18: #{tpu_custom_call.1} parent=1 // pred_check
      _
    $region19: #{tpu_custom_call.1} parent=1 // pred_check_branch
      %46 = sbr.rel (0) target = $region21
    $region20: #{tpu_custom_call.1} parent=1 // pred_region
      %47 = dma.done [#allocation3], 256
    $region21: #{tpu_custom_call.1} parent=1 // pred_fallthru
      _
    %48 = vsyncpa [#allocation3], 1

</llo_original>
